<compile_context>
chip_gen: v7x
topology: tpu7x:2x2x1
jax: 0.10.0
libtpu: 0.0.40
codegen_flags: <defaults>
</compile_context>

<pallas_src>
import functools

import jax
import jax.numpy as jnp
from jax.experimental import pallas as pl
from jax.experimental.pallas import tpu as pltpu


def _round_up(n, m):
    return ((n + m - 1) // m) * m


def _logreg_kernel(x_ref, w_ref, b_ref, o_ref, *, use_mxu):
    """One batch tile: logits = x @ w + b ; y = sigmoid(logits).

    x_ref : (TB, F)  VMEM, streamed (double-buffered) over the batch grid axis
    w_ref : (F, 1) [MXU path] or (1, F) [VPU path], VMEM-resident
    b_ref : (1,)    SMEM scalar
    o_ref : (TB, 1) VMEM
    """
    x = x_ref[...]
    b = b_ref[0]
    if use_mxu:
        # GEMV on the MXU with f32 accumulation.
        logits = jnp.dot(x, w_ref[...], preferred_element_type=jnp.float32) + b
    else:
        # Small F: the MXU would use only 1/128-1/256 of its columns, so do a
        # VPU elementwise multiply + XLU lane reduction instead.
        logits = jnp.sum(
            x.astype(jnp.float32) * w_ref[...].astype(jnp.float32),
            axis=-1, keepdims=True) + b
    o_ref[...] = jax.nn.sigmoid(logits).astype(o_ref.dtype)


def logistic_regression(x, weight, bias, *, block_b=None, compute_dtype=None):
    """y = sigmoid(x @ weight.T + bias).

    x      : (B, F)
    weight : (1, F)  (PyTorch nn.Linear layout)
    bias   : (1,)
    block_b: optional batch tile size override (multiple of 8).
    compute_dtype: optionally cast x/weight (e.g. jnp.bfloat16) to halve HBM
                   traffic; accumulation stays f32. Default keeps f32 numerics.
    """
    B, F = x.shape
    out_dtype = x.dtype

    if compute_dtype is not None:
        x = x.astype(compute_dtype)
        weight = weight.astype(compute_dtype)

    # Below ~128 features the MXU is mostly idle columns; use the VPU/XLU path.
    use_mxu = F >= 128

    # --- batch tile size --------------------------------------------------
    itemsize = jnp.dtype(x.dtype).itemsize
    if block_b is None:
        tb = (4 * 1024 * 1024) // max(1, F * itemsize)   # ~4 MiB per x buffer
        tb = max(128, min(2048, tb))
    else:
        tb = int(block_b)
    tb = max(8, (tb // 8) * 8)            # sublane multiple
    tb = min(tb, _round_up(B, 8))         # don't over-pad tiny batches

    b_pad = _round_up(B, tb)
    if b_pad != B:
        x = jnp.pad(x, ((0, b_pad - B), (0, 0)))

    w = weight.reshape(1, F).T if use_mxu else weight.reshape(1, F)
    b_smem = bias.reshape(1).astype(jnp.float32)

    grid = (b_pad // tb,)
    w_block = (F, 1) if use_mxu else (1, F)

    y = pl.pallas_call(
        functools.partial(_logreg_kernel, use_mxu=use_mxu),
        out_shape=jax.ShapeDtypeStruct((b_pad, 1), out_dtype),
        grid_spec=pltpu.PrefetchScalarGridSpec(
            num_scalar_prefetch=0,
            grid=grid,
            in_specs=[
                # x: streamed over the batch axis (auto double-buffered pipeline).
                pl.BlockSpec((tb, F), lambda i: (i, 0)),
                # weight: constant index map -> stays VMEM-resident across tiles.
                pl.BlockSpec(w_block, lambda i: (0, 0)),
                # bias: single scalar in SMEM (no padded VMEM tile).
                pl.BlockSpec(memory_space=pltpu.MemorySpace.SMEM),
            ],
            out_specs=pl.BlockSpec((tb, 1), lambda i: (i, 0)),
        ),
        compiler_params=pltpu.CompilerParams(
            # Batch tiles are independent -> shard across both TCs on v7x.
            dimension_semantics=("parallel",),
        ),
    )(x, w, b_smem)

    return y[:B] if b_pad != B else y


if __name__ == "__main__":
    # NOTE: at these toy sizes the kernel is pure launch overhead vs. XLA; the
    # tiling/pipelining wins show up at production-scale B (and larger F).

    # --- Case 1: module's toy config (F=32 -> VPU path, single tile) -------
    n_features = 32
    batch = 8
    kx, kw, kb = jax.random.split(jax.random.PRNGKey(0), 3)
    bound = 1.0 / jnp.sqrt(jnp.float32(n_features))
    weight = jax.random.uniform(kw, (1, n_features), jnp.float32, -bound, bound)
    bias = jax.random.uniform(kb, (1,), jnp.float32, -bound, bound)
    x = jax.random.normal(kx, (batch, n_features), jnp.float32)

    y = logistic_regression(x, weight, bias)
    jax.block_until_ready(y)
    y_ref = jax.nn.sigmoid(x @ weight.T + bias)
    assert y.shape == (batch, 1)
    assert jnp.allclose(y, y_ref, atol=1e-5, rtol=1e-5)

    # --- Case 2: MXU path + multi-tile grid + batch padding ----------------
    n_features2 = 256
    batch2 = 50                      # not a multiple of the tile -> padding path
    k2x, k2w, k2b = jax.random.split(jax.random.PRNGKey(1), 3)
    bound2 = 1.0 / jnp.sqrt(jnp.float32(n_features2))
    weight2 = jax.random.uniform(k2w, (1, n_features2), jnp.float32, -bound2, bound2)
    bias2 = jax.random.uniform(k2b, (1,), jnp.float32, -bound2, bound2)
    x2 = jax.random.normal(k2x, (batch2, n_features2), jnp.float32)

    y2 = logistic_regression(x2, weight2, bias2, block_b=16)   # grid of 4 tiles
    jax.block_until_ready(y2)
    y2_ref = jax.nn.sigmoid(x2 @ weight2.T + bias2)
    assert y2.shape == (batch2, 1)
    assert jnp.allclose(y2, y2_ref, atol=1e-5, rtol=1e-5)

    print("KERNEL_OK")
</pallas_src>

<mosaic_0001>
module attributes {stable_mosaic.version = 11 : i64} {
  func.func @_logreg_kernel(%arg0: i32, %arg1: memref<8x32xf32, #tpu.memory_space<vmem>>, %arg2: memref<1x32xf32, #tpu.memory_space<vmem>>, %arg3: memref<1xf32, #tpu.memory_space<smem>>, %arg4: memref<8x1xf32, #tpu.memory_space<vmem>>) attributes {dimension_semantics = [#tpu.dimension_semantics<parallel>], iteration_bounds = array<i64: 1>, scalar_prefetch = 0 : i64, scratch_operands = 0 : i64, tpu.core_type = #tpu.core_type<tc>, window_params = [{transform_indices = @transform_0, window_bounds = array<i64: 8, 32>}, {pipeline_mode = #tpu.pipeline_mode<synchronous>, transform_indices = @transform_1, window_bounds = array<i64: 1, 32>}, {transform_indices = @transform_2, window_bounds = array<i64: 1>}, {transform_indices = @transform_3, window_bounds = array<i64: 8, 1>}]} {
    %c0 = arith.constant 0 : index
    %c0_0 = arith.constant 0 : index
    %0 = vector.load %arg1[%c0, %c0_0] : memref<8x32xf32, #tpu.memory_space<vmem>>, vector<8x32xf32>
    %c0_1 = arith.constant 0 : index
    %1 = memref.load %arg3[%c0_1] : memref<1xf32, #tpu.memory_space<smem>>
    %c0_2 = arith.constant 0 : index
    %c0_3 = arith.constant 0 : index
    %2 = vector.load %arg2[%c0_2, %c0_3] : memref<1x32xf32, #tpu.memory_space<vmem>>, vector<1x32xf32>
    %3 = vector.broadcast %2 : vector<1x32xf32> to vector<8x32xf32>
    %4 = arith.mulf %0, %3 : vector<8x32xf32>
    %cst = arith.constant dense<0.000000e+00> : vector<8xf32>
    %5 = vector.multi_reduction <add>, %4, %cst [1] : vector<8x32xf32> to vector<8xf32>
    %6 = vector.shape_cast %5 : vector<8xf32> to vector<8x1xf32>
    %7 = vector.broadcast %1 : f32 to vector<8x1xf32>
    %8 = arith.addf %6, %7 : vector<8x1xf32>
    %9 = arith.negf %8 : vector<8x1xf32>
    %10 = math.exp %9 : vector<8x1xf32>
    %cst_4 = arith.constant 1.000000e+00 : f32
    %11 = vector.broadcast %cst_4 : f32 to vector<8x1xf32>
    %12 = arith.addf %11, %10 : vector<8x1xf32>
    %13 = arith.divf %11, %12 : vector<8x1xf32>
    %c0_5 = arith.constant 0 : index
    %c0_6 = arith.constant 0 : index
    %14 = vector.load %arg4[%c0_5, %c0_6] : memref<8x1xf32, #tpu.memory_space<vmem>>, vector<8x1xf32>
    tpu.vector_store %arg4[%c0_5, %c0_6], %13 {strides = array<i32>} : memref<8x1xf32, #tpu.memory_space<vmem>>, vector<8x1xf32>,
    return
  }
  func.func @transform_0(%arg0: i32) -> (i32, i32) {
    %c0_i32 = arith.constant 0 : i32
    %c0_i32_0 = arith.constant 0 : i32
    return %arg0, %c0_i32 : i32, i32
  }
  func.func @transform_1(%arg0: i32) -> (i32, i32) {
    %c0_i32 = arith.constant 0 : i32
    %c0_i32_0 = arith.constant 0 : i32
    %c0_i32_1 = arith.constant 0 : i32
    return %c0_i32, %c0_i32_0 : i32, i32
  }
  func.func @transform_2(%arg0: i32) -> i32 {
    %c0_i32 = arith.constant 0 : i32
    %c0_i32_0 = arith.constant 0 : i32
    return %c0_i32 : i32
  }
  func.func @transform_3(%arg0: i32) -> (i32, i32) {
    %c0_i32 = arith.constant 0 : i32
    %c0_i32_0 = arith.constant 0 : i32
    return %arg0, %c0_i32 : i32, i32
  }
}

</mosaic_0001>

<llo_original>
// kernel: tpu_custom_call.1
$region0: #{tpu_custom_call.1}
  #allocation0 [shape = 'u32[]', space=smem, size = 0x4, offset = 0x4, fixed_abs, tag = 'smem constant byte address 0x4 - core index']
  #allocation1 [shape = 'u32[144,128]{1,0:T(1,128)}', space=vmem, size = 0x12000, scoped, tag = 'internal scratch']
  #allocation2 [shape = 'f32[1]{0:T(128)S(6)}', space=smem, size = 0x200, scoped, tag = 'scoped memory for tpu_custom_call.1']
  %s0 = inlined_call_operand.hbm [shape: f32[8,32], index: 0, kind: input, shape index: {}]
  %s1 = inlined_call_operand.vmem [shape: f32[1,32], index: 1, kind: input, shape index: {}]
  %s2 = inlined_call_operand.<no memory space> [shape: f32[1], index: 2, kind: input, shape index: {}]
  %s3 = inlined_call_operand.vmem [shape: f32[8,1], index: 3, kind: output, shape index: {}]
  %s4 = sld [smem:[#allocation0]]
  $region26: #{tpu_custom_call.1} parent=0
    _
  %s6 = ssub.s32 1, %s4
  %s7 = scalar_select 0, %s6, %s4
  %8 = sst [smem:[#allocation2]] %s2
  $region1: #{tpu_custom_call.1} parent=0
    #allocation3 [shape = 'u8[4096]{0}', space=vmem, size = 0x1000, scoped, tag = 'input window, operand 0, single buffered']
    #allocation4 [shape = 's32[1]{0}', space=sflag, size = 0x4, scoped, tag = 'scoped memory for tpu_custom_call.1']
    %9 = vsyncpa [#allocation4], 0
    // Predicated region
    $region2: #{tpu_custom_call.1} parent=1 // pred_check
      _
    $region3: #{tpu_custom_call.1} parent=1 // pred_check_branch
      %11 = sbr.rel (0) target = $region5
    $region4: #{tpu_custom_call.1} parent=1 // pred_region
      %s13 = ssub.s32 128, 128
      %14 = vsyncadd [#allocation4], %s13
      %s16 = sshll.u32 [#allocation3], 4
      %s17 = int_to_ptr.vmem [resolvable:$true] %s16
      %19 = dma.hbm_to_vmem [thread:$0]  %s0, 128, %s17, [#allocation4]
    $region5: #{tpu_custom_call.1} parent=1 // pred_fallthru
      _
    // Predicated region
    $region6: #{tpu_custom_call.1} parent=1 // pred_check
      _
    $region7: #{tpu_custom_call.1} parent=1 // pred_check_branch
      %21 = sbr.rel (0) target = $region9
    $region8: #{tpu_custom_call.1} parent=1 // pred_region
      _
    $region9: #{tpu_custom_call.1} parent=1 // pred_fallthru
      _
    // Predicated region
    $region10: #{tpu_custom_call.1} parent=1 // pred_check
      _
    $region11: #{tpu_custom_call.1} parent=1 // pred_check_branch
      %23 = sbr.rel (0) target = $region13
    $region12: #{tpu_custom_call.1} parent=1 // pred_region
      _
    $region13: #{tpu_custom_call.1} parent=1 // pred_fallthru
      _
    // Predicated region
    $region14: #{tpu_custom_call.1} parent=1 // pred_check
      _
    $region15: #{tpu_custom_call.1} parent=1 // pred_check_branch
      %25 = sbr.rel (0) target = $region17
    $region16: #{tpu_custom_call.1} parent=1 // pred_region
      %26 = dma.done [#allocation4], 128
    $region17: #{tpu_custom_call.1} parent=1 // pred_fallthru
      _
    %v27 = vld [vmem:[#allocation3] sm:$0xff]
    %s28 = sld [smem:[#allocation2]]
    %v29 = vld [vmem:[%s1] sm:$0x1]
    %v31 = vlaneseq
    %v32 = vshrl.u32 %v31, 7
    %v33 = vsub.s32 0, %v32
    %v34 = vrot.slane %v29, %v33
    %v36 = vmul.f32 %v27, %v34
    %vm37 = vcmask 261120
    %v38 = vsel %vm37, %v36, 0.0
    %39 = vadd.xlane.f32.xlu0 %v38
    %v40 = vpop.xlane.xlu0 %39
    %v41 = vstv %s28
    %v42 = vadd.f32 %v40, %v41
    %v43 = vxor.u32 %v42, 2147483648
    %v44 = vmul.f32 %v43, 1.442695
    %v45 = vpow.pop %v44
    %v46 = vadd.f32 %v45, 1.0
    %v47 = vrcp.pop %v46
    %v48 = vmul.f32 1.0, %v47
    %vm49 = vcmask 7168
    %50 = vst.msk [vmem:[%s3] sm:$0xff] %vm49, %v48
    // Predicated region
    $region18: #{tpu_custom_call.1} parent=1 // pred_check
      _
    $region19: #{tpu_custom_call.1} parent=1 // pred_check_branch
      %52 = sbr.rel (0) target = $region21
    $region20: #{tpu_custom_call.1} parent=1 // pred_region
      _
    $region21: #{tpu_custom_call.1} parent=1 // pred_fallthru
      _
    // Predicated region
    $region22: #{tpu_custom_call.1} parent=1 // pred_check
      _
    $region23: #{tpu_custom_call.1} parent=1 // pred_check_branch
      %54 = sbr.rel (0) target = $region25
    $region24: #{tpu_custom_call.1} parent=1 // pred_region
      _
    $region25: #{tpu_custom_call.1} parent=1 // pred_fallthru
      _
    %55 = vsyncpa [#allocation4], 1

</llo_original>
